<compile_context>
chip_gen: v6e
topology: v6e:2x2x1
jax: 0.10.0
libtpu: 0.0.40
codegen_flags: <defaults>
</compile_context>

<pallas_src>
import functools

import jax
import jax.numpy as jnp
import numpy as np
from jax.experimental import pallas as pl
from jax.experimental.pallas import tpu as pltpu


def _round_up(a, b):
    return (a + b - 1) // b * b


def _pick_tile(total, cap):
    """Largest multiple of 128 that divides `total` (a multiple of 128) and is <= cap."""
    best, t = 128, 128
    while t <= min(total, cap):
        if total % t == 0:
            best = t
        t += 128
    return best


def _compiler_params(semantics, plan_bytes):
    """Per-generation scoped-VMEM budget from the real buffer plan (only ever raises it)."""
    budget = int(plan_bytes) + (8 << 20)              # Mosaic temporaries / epilogue slack
    kwargs = dict(dimension_semantics=semantics)
    if budget > (16 << 20):                           # only override the conservative default
        try:
            cap = int(pltpu.get_tpu_info().vmem_capacity_bytes)
        except Exception:                             # CPU AOT / interpret fallback
            cap = 64 << 20                            # v7x-safe assumption
        kwargs["vmem_limit_bytes"] = int(min(max(budget, 32 << 20), cap - (12 << 20)))
    return pltpu.CompilerParams(**kwargs)


# ----------------------------- pass 1: group sums -----------------------------
def _group_sum_kernel(lbl_ref, x_ref, vsum_ref, *, compute_dtype):
    """Accumulate per-group feature sums for one D tile (resident over the N axis)."""
    @pl.when(pl.program_id(1) == 0)
    def _init():
        vsum_ref[...] = jnp.zeros_like(vsum_ref)

    lbl = lbl_ref[...]                                        # (1, TN) int32, -1 = padded row
    up = vsum_ref.shape[0]
    tn = lbl.shape[1]
    # One-hot built already transposed (Up, TN): plain MXU feed, no per-step transpose.
    row = jax.lax.broadcasted_iota(jnp.int32, (up, tn), 0)
    onehot_t = (row == lbl).astype(compute_dtype)             # padded rows -> all-zero columns
    x = x_ref[...].astype(compute_dtype)                      # (TN, TD)
    vsum_ref[...] += jax.lax.dot_general(
        onehot_t, x, (((1,), (0,)), ((), ())),
        preferred_element_type=jnp.float32)


# -------------------- pass 1.5: one-shot V normalization ----------------------
def _normalize_kernel(vsum_ref, vn_ref, *, inv_beta):
    """F.normalize(v) with 1/beta folded in, computed once (hoisted out of pass 2)."""
    vs = vsum_ref[...]                                        # (TU, Dp) f32 group sums
    # The 1/count of the torch mean cancels under the L2 norm, so the raw sums are
    # normalized directly; rsqrt(max(ss,1e-24)) == divide-by-max(norm, 1e-12).
    inv = jax.lax.rsqrt(jnp.maximum(jnp.sum(vs * vs, axis=-1, keepdims=True), 1e-24))
    vn_ref[...] = (vs * (inv * jnp.float32(inv_beta))).astype(vn_ref.dtype)


# ------------------------- pass 2: logits + cross-entropy ----------------------
def _ce_kernel(lbl_ref, x_ref, vn_ref, bias_ref, out_ref, *, compute_dtype):
    lbl = lbl_ref[...]                                        # (TN, 1) int32, -1 = padded row
    x = x_ref[...].astype(jnp.float32)                        # (TN, Dp)
    xn = x * jax.lax.rsqrt(jnp.maximum(jnp.sum(x * x, axis=-1, keepdims=True), 1e-24))
    # vn is already L2-normalized with 1/beta folded in (pass 1.5); padded groups are
    # masked by the precomputed additive bias row (0 real / -1e30 padded).
    logits = jax.lax.dot_general(
        xn.astype(compute_dtype), vn_ref[...],
        (((1,), (1,)), ((), ())),
        preferred_element_type=jnp.float32) + bias_ref[...]   # (TN, Up)
    m = jnp.max(logits, axis=-1, keepdims=True)
    lse = m + jnp.log(jnp.sum(jnp.exp(logits - m), axis=-1, keepdims=True))
    col = jax.lax.broadcasted_iota(jnp.int32, logits.shape, 1)
    tgt = jnp.sum(jnp.where(col == lbl, logits, 0.0), axis=-1, keepdims=True)
    row_ok = (lbl >= 0).astype(jnp.float32)                   # zero padded rows
    partial = jnp.sum((lse - tgt) * row_ok)
    out_ref[...] = jnp.full(out_ref.shape, partial, jnp.float32)   # lane-dense block


def local_loss(x, idx, beta=0.1, compute_dtype=jnp.float32):
    """JAX/Pallas equivalent of LocalLoss.forward(x, idx)."""
    x = jnp.asarray(x)
    idx = np.asarray(idx)
    N, D = x.shape

    # Host-side glue: torch.unique + sorted dict relabel == searchsorted into sorted uniques.
    # TODO(synk): data-dependent unique() stays on host; idx must be concrete (no end-to-end jit).
    uni = np.unique(idx)
    labels = np.searchsorted(uni, idx).astype(np.int32)
    U = int(uni.shape[0])

    # Static, lane-aligned padded shapes.  512-row tiles; D split into lane-dense TD tiles
    # so pass 1 gets a parallel axis (2nd TensorCore on v7x) and a smaller resident block.
    Dp = _round_up(max(D, 1), 128)
    Up = _round_up(max(U, 1), 128)
    TN = min(512, _round_up(max(N, 1), 128))
    Np = _round_up(N, TN)
    nt = Np // TN
    TD = _pick_tile(Dp, 512)
    nd = Dp // TD
    TU = _pick_tile(Up, 256)
    nu = Up // TU

    # bf16 compute also stores x and the normalized V in bf16 (halves HBM + resident VMEM).
    x_store = jnp.bfloat16 if compute_dtype == jnp.bfloat16 else jnp.float32
    v_store = x_store
    x_bytes = np.dtype(x_store).itemsize
    v_bytes = np.dtype(v_store).itemsize

    xp = jnp.zeros((Np, Dp), x_store).at[:N, :D].set(x.astype(x_store))
    lbl_row = jnp.full((1, Np), -1, jnp.int32).at[0, :N].set(jnp.asarray(labels))
    lbl_col = jnp.full((Np, 1), -1, jnp.int32).at[:N, 0].set(jnp.asarray(labels))
    bias = jnp.where(jnp.arange(Up, dtype=jnp.int32) < U,
                     jnp.float32(0.0), jnp.float32(-1e30))[None, :]      # (1, Up)

    # ---- pass 1: per-group feature sums; grid = (D tiles [parallel], N tiles [reduce])
    p1_plan = 2 * (TN * TD * x_bytes + TN * 4) + 2 * Up * TD * 4
    gsum = pl.pallas_call(
        functools.partial(_group_sum_kernel, compute_dtype=compute_dtype),
        grid_spec=pltpu.PrefetchScalarGridSpec(
            num_scalar_prefetch=0,
            grid=(nd, nt),
            in_specs=[
                pl.BlockSpec((1, TN), lambda d, i: (0, i)),        # label row (transposed one-hot)
                pl.BlockSpec((TN, TD), lambda d, i: (i, d)),       # x tile
            ],
            out_specs=pl.BlockSpec((Up, TD), lambda d, i: (0, d)), # resident accumulator per D tile
        ),
        out_shape=jax.ShapeDtypeStruct((Up, Dp), jnp.float32),
        compiler_params=_compiler_params(("parallel", "arbitrary"), p1_plan),
        cost_estimate=pl.CostEstimate(
            flops=2 * Np * Up * Dp, transcendentals=0,
            bytes_accessed=Np * Dp * x_bytes + nd * Np * 4 + Up * Dp * 4),
    )(lbl_row, xp)

    # ---- pass 1.5: normalize V once (1/beta folded in), hoisted out of the pass-2 loop
    p15_plan = 2 * TU * Dp * 4 + 2 * TU * Dp * v_bytes
    vn = pl.pallas_call(
        functools.partial(_normalize_kernel, inv_beta=1.0 / float(beta)),
        grid_spec=pltpu.PrefetchScalarGridSpec(
            num_scalar_prefetch=0,
            grid=(nu,),
            in_specs=[pl.BlockSpec((TU, Dp), lambda i: (i, 0))],
            out_specs=pl.BlockSpec((TU, Dp), lambda i: (i, 0)),
        ),
        out_shape=jax.ShapeDtypeStruct((Up, Dp), v_store),
        compiler_params=_compiler_params(("parallel",), p15_plan),
        cost_estimate=pl.CostEstimate(
            flops=3 * Up * Dp, transcendentals=Up,
            bytes_accessed=Up * Dp * 4 + Up * Dp * v_bytes),
    )(gsum)

    # ---- pass 2: normalize x, logits, masked cross-entropy partial sums per tile
    p2_plan = (2 * (TN * Dp * x_bytes + TN * 4)        # pipelined x + label tiles
               + 2 * Up * Dp * v_bytes + 2 * Up * 4    # resident vn + bias row
               + 2 * 8 * 128 * 4)                      # lane-dense per-tile partials
    partials = pl.pallas_call(
        functools.partial(_ce_kernel, compute_dtype=compute_dtype),
        grid_spec=pltpu.PrefetchScalarGridSpec(
            num_scalar_prefetch=0,
            grid=(nt,),
            in_specs=[
                pl.BlockSpec((TN, 1), lambda i: (i, 0)),           # label column
                pl.BlockSpec((TN, Dp), lambda i: (i, 0)),          # x tile
                # TODO(synk): single-buffer these grid-invariant operands (pl.Buffered(1) /
                # whole-array VMEM residency) once that path is plumbed for TPU pallas_call;
                # bf16 storage under compute_dtype=bf16 already halves their footprint.
                pl.BlockSpec((Up, Dp), lambda i: (0, 0)),          # normalized V (resident)
                pl.BlockSpec((1, Up), lambda i: (0, 0)),           # padded-group bias row
            ],
            out_specs=pl.BlockSpec((1, 8, 128), lambda i: (i, 0, 0)),
        ),
        out_shape=jax.ShapeDtypeStruct((nt, 8, 128), jnp.float32),
        compiler_params=_compiler_params(("parallel",), p2_plan),  # independent tiles -> 2 TCs on v7x
        cost_estimate=pl.CostEstimate(
            flops=2 * Np * Up * Dp + 8 * Np * Dp,
            transcendentals=Np * Up + 2 * Np,
            bytes_accessed=Np * Dp * x_bytes + Np * 4 + Up * Dp * v_bytes + nt * 8 * 128 * 4),
    )(lbl_col, xp, vn, bias)

    # Mean over the real rows (per-tile partial sums first; padded rows contribute zero).
    return jnp.sum(partials[:, 0, 0]) / jnp.float32(N)


def _ref_local_loss(x, idx, beta=0.1):
    """NumPy reference matching the PyTorch module."""
    x = np.asarray(x, np.float64)
    idx = np.asarray(idx)
    uni = np.unique(idx)
    v = np.stack([x[idx == u].mean(axis=0) for u in uni], axis=0)
    labels = np.searchsorted(uni, idx)
    v = v / np.maximum(np.linalg.norm(v, axis=1, keepdims=True), 1e-12)
    xn = x / np.maximum(np.linalg.norm(x, axis=1, keepdims=True), 1e-12)
    logits = xn @ v.T / beta
    m = logits.max(axis=1, keepdims=True)
    logp = logits - (m + np.log(np.exp(logits - m).sum(axis=1, keepdims=True)))
    return -logp[np.arange(len(idx)), labels].mean()


if __name__ == "__main__":
    key = jax.random.PRNGKey(0)
    kx, ki = jax.random.split(key)

    N, D, K = 16, 32, 4                                      # batch, feature dim, distinct ids
    x = jax.random.normal(kx, (N, D), jnp.float32)
    group_vals = np.array([3, 7, 11, 20], dtype=np.int32)    # arbitrary id values
    gid = np.asarray(jax.random.randint(ki, (N,), 0, K))
    idx = group_vals[gid]

    loss = jax.block_until_ready(local_loss(x, idx, beta=0.1))

    ref = _ref_local_loss(np.asarray(x), idx, beta=0.1)
    assert abs(float(loss) - float(ref)) < 1e-3, (float(loss), float(ref))
    print("KERNEL_OK")
</pallas_src>

<mosaic_0001>
module attributes {stable_mosaic.version = 11 : i64} {
  func.func @_group_sum_kernel(%arg0: i32, %arg1: i32, %arg2: memref<1x128xi32, #tpu.memory_space<vmem>>, %arg3: memref<128x128xf32, #tpu.memory_space<vmem>>, %arg4: memref<128x128xf32, #tpu.memory_space<vmem>>) attributes {dimension_semantics = [#tpu.dimension_semantics<parallel>, #tpu.dimension_semantics<arbitrary>], iteration_bounds = array<i64: 1, 1>, scalar_prefetch = 0 : i64, scratch_operands = 0 : i64, tpu.core_type = #tpu.core_type<tc>, window_params = [{transform_indices = @transform_0, window_bounds = array<i64: 1, 128>}, {transform_indices = @transform_1, window_bounds = array<i64: 128, 128>}, {transform_indices = @transform_2, window_bounds = array<i64: 128, 128>}]} {
    %c0_i32 = arith.constant 0 : i32
    %0 = arith.cmpi eq, %arg1, %c0_i32 : i32
    %1 = arith.extui %0 : i1 to i32
    %c0_i32_0 = arith.constant 0 : i32
    %2 = arith.cmpi ne, %1, %c0_i32_0 : i32
    scf.if %2 {
      %cst_8 = arith.constant 0.000000e+00 : f32
      %14 = vector.broadcast %cst_8 : f32 to vector<128x128xf32>
      %c0_9 = arith.constant 0 : index
      %c0_10 = arith.constant 0 : index
      %15 = vector.load %arg4[%c0_9, %c0_10] : memref<128x128xf32, #tpu.memory_space<vmem>>, vector<128x128xf32>
      tpu.vector_store %arg4[%c0_9, %c0_10], %14 {strides = array<i32>} : memref<128x128xf32, #tpu.memory_space<vmem>>, vector<128x128xf32>,
    } else {
    }
    %c0 = arith.constant 0 : index
    %c0_1 = arith.constant 0 : index
    %3 = vector.load %arg2[%c0, %c0_1] : memref<1x128xi32, #tpu.memory_space<vmem>>, vector<1x128xi32>
    %4 = tpu.iota {dimensions = array<i32: 0>} : vector<128x128xi32>
    %5 = vector.broadcast %3 : vector<1x128xi32> to vector<128x128xi32>
    %6 = arith.cmpi eq, %4, %5 : vector<128x128xi32>
    %7 = arith.extui %6 : vector<128x128xi1> to vector<128x128xi32>
    %8 = arith.sitofp %7 : vector<128x128xi32> to vector<128x128xf32>
    %c0_2 = arith.constant 0 : index
    %c0_3 = arith.constant 0 : index
    %9 = vector.load %arg3[%c0_2, %c0_3] : memref<128x128xf32, #tpu.memory_space<vmem>>, vector<128x128xf32>
    %c0_4 = arith.constant 0 : index
    %c0_5 = arith.constant 0 : index
    %10 = vector.load %arg4[%c0_4, %c0_5] : memref<128x128xf32, #tpu.memory_space<vmem>>, vector<128x128xf32>
    %cst = arith.constant dense<0.000000e+00> : vector<128x128xf32>
    %11 = tpu.matmul %8, %9, %cst {dimension_numbers = #tpu.dot_dimension_numbers<[1], [0], [0], [1], [0, 0, 1, 1], [], []>} : vector<128x128xf32>, vector<128x128xf32>, vector<128x128xf32> -> vector<128x128xf32>
    %12 = arith.addf %10, %11 : vector<128x128xf32>
    %c0_6 = arith.constant 0 : index
    %c0_7 = arith.constant 0 : index
    %13 = vector.load %arg4[%c0_6, %c0_7] : memref<128x128xf32, #tpu.memory_space<vmem>>, vector<128x128xf32>
    tpu.vector_store %arg4[%c0_6, %c0_7], %12 {strides = array<i32>} : memref<128x128xf32, #tpu.memory_space<vmem>>, vector<128x128xf32>,
    return
  }
  func.func @transform_0(%arg0: i32, %arg1: i32) -> (i32, i32) {
    %c0_i32 = arith.constant 0 : i32
    %c0_i32_0 = arith.constant 0 : i32
    return %c0_i32, %arg1 : i32, i32
  }
  func.func @transform_1(%arg0: i32, %arg1: i32) -> (i32, i32) {
    %c0_i32 = arith.constant 0 : i32
    return %arg1, %arg0 : i32, i32
  }
  func.func @transform_2(%arg0: i32, %arg1: i32) -> (i32, i32) {
    %c0_i32 = arith.constant 0 : i32
    %c0_i32_0 = arith.constant 0 : i32
    return %c0_i32, %arg0 : i32, i32
  }
}

</mosaic_0001>

<llo_original>
// kernel: tpu_custom_call.1
$region0: #{tpu_custom_call.1}
  #allocation0 [shape = 'u32[]', space=smem, size = 0x4, offset = 0x4, fixed_abs, tag = 'smem constant byte address 0x4 - core index']
  #allocation1 [shape = 'u32[144,128]{1,0:T(1,128)}', space=vmem, size = 0x12000, scoped, tag = 'internal scratch']
  %s0 = inlined_call_operand.hbm [shape: s32[1,128], index: 0, kind: input, shape index: {}]
  %s1 = inlined_call_operand.hbm [shape: f32[128,128], index: 1, kind: input, shape index: {}]
  %s2 = inlined_call_operand.hbm [shape: f32[128,128], index: 2, kind: output, shape index: {}]
  %s3 = sld [smem:[#allocation0]]
  $region30: #{tpu_custom_call.1} parent=0
    _
  %s5 = ssub.s32 1, %s3
  %s6 = scalar_select 0, %s5, %s3
  $region1: #{tpu_custom_call.1} parent=0
    #allocation2 [shape = 'u8[512]{0}', space=vmem, size = 0x400, scoped, tag = 'input window, operand 0, single buffered']
    #allocation3 [shape = 's32[1]{0}', space=sflag, size = 0x4, scoped, tag = 'scoped memory for tpu_custom_call.1']
    #allocation4 [shape = 's32[1]{0}', space=sflag, size = 0x4, scoped, tag = 'scoped memory for tpu_custom_call.1']
    #allocation5 [shape = 'u8[65536]{0}', space=vmem, size = 0x10000, scoped, tag = 'input window, operand 1, single buffered']
    #allocation6 [shape = 's32[1]{0}', space=sflag, size = 0x4, scoped, tag = 'scoped memory for tpu_custom_call.1']
    #allocation7 [shape = 'u8[65536]{0}', space=vmem, size = 0x10000, scoped, tag = 'output window, operand 0, single buffered']
    %7 = vsyncpa [#allocation3], 0
    %8 = vsyncpa [#allocation6], 0
    %9 = vsyncpa [#allocation4], 0
    // Predicated region
    $region2: #{tpu_custom_call.1} parent=1 // pred_check
      _
    $region3: #{tpu_custom_call.1} parent=1 // pred_check_branch
      %11 = sbr.rel (0) target = $region5
    $region4: #{tpu_custom_call.1} parent=1 // pred_region
      %s13 = ssub.s32 16, 16
      %14 = vsyncadd [#allocation3], %s13
      %s16 = sshll.u32 [#allocation2], 4
      %s17 = int_to_ptr.vmem [resolvable:$true] %s16
      %19 = dma.hbm_to_vmem [thread:$0]  %s0, 16, %s17, [#allocation3]
    $region5: #{tpu_custom_call.1} parent=1 // pred_fallthru
      _
    // Predicated region
    $region6: #{tpu_custom_call.1} parent=1 // pred_check
      _
    $region7: #{tpu_custom_call.1} parent=1 // pred_check_branch
      %21 = sbr.rel (0) target = $region9
    $region8: #{tpu_custom_call.1} parent=1 // pred_region
      %s23 = ssub.s32 2048, 2048
      %24 = vsyncadd [#allocation6], %s23
      %s25 = sshll.u32 [#allocation5], 4
      %s26 = int_to_ptr.vmem [resolvable:$true] %s25
      %31 = dma.hbm_to_vmem [thread:$0]  %s1, 2048, %s26, [#allocation6], 128, 128, 8
    $region9: #{tpu_custom_call.1} parent=1 // pred_fallthru
      _
    // Predicated region
    $region10: #{tpu_custom_call.1} parent=1 // pred_check
      _
    $region11: #{tpu_custom_call.1} parent=1 // pred_check_branch
      %33 = sbr.rel (0) target = $region13
    $region12: #{tpu_custom_call.1} parent=1 // pred_region
      %34 = dma.done [#allocation3], 16
    $region13: #{tpu_custom_call.1} parent=1 // pred_fallthru
      _
    // Predicated region
    $region14: #{tpu_custom_call.1} parent=1 // pred_check
      _
    $region15: #{tpu_custom_call.1} parent=1 // pred_check_branch
      %36 = sbr.rel (0) target = $region17
    $region16: #{tpu_custom_call.1} parent=1 // pred_region
      %37 = dma.done [#allocation6], 2048
    $region17: #{tpu_custom_call.1} parent=1 // pred_fallthru
      _
    %p38 = scmp.eq.s32.totalorder 0, 0
    // Predicated region
    $region18: #{tpu_custom_call.1} parent=1 // pred_check
      %p39 = pneg %p38
    $region19: #{tpu_custom_call.1} parent=1 // pred_check_branch
      %41 = sbr.rel (%p39) target = $region21
    $region20: #{tpu_custom_call.1} parent=1 // pred_region
      %42 = vst [vmem:[#allocation7] sm:$0xff] 0.0
      %43 = vst [vmem:[#allocation7 + $0x8] sm:$0xff] 0.0
      %44 = vst [vmem:[#allocation7 + $0x10] sm:$0xff] 0.0
      %45 = vst [vmem:[#allocation7 + $0x18] sm:$0xff] 0.0
      %46 = vst [vmem:[#allocation7 + $0x20] sm:$0xff] 0.0
      %47 = vst [vmem:[#allocation7 + $0x28] sm:$0xff] 0.0
      %48 = vst [vmem:[#allocation7 + $0x30] sm:$0xff] 0.0
      %49 = vst [vmem:[#allocation7 + $0x38] sm:$0xff] 0.0
      %50 = vst [vmem:[#allocation7 + $0x40] sm:$0xff] 0.0
      %51 = vst [vmem:[#allocation7 + $0x48] sm:$0xff] 0.0
      %52 = vst [vmem:[#allocation7 + $0x50] sm:$0xff] 0.0
      %53 = vst [vmem:[#allocation7 + $0x58] sm:$0xff] 0.0
      %54 = vst [vmem:[#allocation7 + $0x60] sm:$0xff] 0.0
      %55 = vst [vmem:[#allocation7 + $0x68] sm:$0xff] 0.0
      %56 = vst [vmem:[#allocation7 + $0x70] sm:$0xff] 0.0
      %57 = vst [vmem:[#allocation7 + $0x78] sm:$0xff] 0.0
    $region21: #{tpu_custom_call.1} parent=1 // pred_fallthru
      _
    %v58 = vld [vmem:[#allocation2] sm:$0x1]
    %v59 = vlaneseq
    %v60 = vshrl.u32 %v59, 7
    %v61 = vadd.s32 %v60, 8
    %v62 = vadd.s32 %v60, 16
    %v63 = vadd.s32 %v60, 24
    %v64 = vadd.s32 %v60, 32
    %v65 = vadd.s32 %v60, 40
    %v66 = vadd.s32 %v60, 48
    %v67 = vadd.s32 %v60, 56
    %v68 = vadd.s32 %v60, 64
    %v69 = vadd.s32 %v60, 72
    %v70 = vadd.s32 %v60, 80
    %v71 = vadd.s32 %v60, 88
    %v72 = vadd.s32 %v60, 96
    %v73 = vadd.s32 %v60, 104
    %v74 = vadd.s32 %v60, 112
    %v75 = vadd.s32 %v60, 120
    %v76 = vlaneseq
    %v77 = vshrl.u32 %v76, 7
    %v78 = vsub.s32 0, %v77
    %v79 = vrot.slane %v58, %v78
    %vm80 = vcmp.eq.s32.totalorder %v60, %v79
    %vm81 = vcmp.eq.s32.totalorder %v61, %v79
    %vm82 = vcmp.eq.s32.totalorder %v62, %v79
    %vm83 = vcmp.eq.s32.totalorder %v63, %v79
    %vm84 = vcmp.eq.s32.totalorder %v64, %v79
    %vm85 = vcmp.eq.s32.totalorder %v65, %v79
    %vm86 = vcmp.eq.s32.totalorder %v66, %v79
    %vm87 = vcmp.eq.s32.totalorder %v67, %v79
    %vm88 = vcmp.eq.s32.totalorder %v68, %v79
    %vm89 = vcmp.eq.s32.totalorder %v69, %v79
    %vm90 = vcmp.eq.s32.totalorder %v70, %v79
    %vm91 = vcmp.eq.s32.totalorder %v71, %v79
    %vm92 = vcmp.eq.s32.totalorder %v72, %v79
    %vm93 = vcmp.eq.s32.totalorder %v73, %v79
    %vm94 = vcmp.eq.s32.totalorder %v74, %v79
    %vm95 = vcmp.eq.s32.totalorder %v75, %v79
    %v96 = vsel %vm80, 1, 0
    %v97 = vsel %vm81, 1, 0
    %v98 = vsel %vm82, 1, 0
    %v99 = vsel %vm83, 1, 0
    %v100 = vsel %vm84, 1, 0
    %v101 = vsel %vm85, 1, 0
    %v102 = vsel %vm86, 1, 0
    %v103 = vsel %vm87, 1, 0
    %v104 = vsel %vm88, 1, 0
    %v105 = vsel %vm89, 1, 0
    %v106 = vsel %vm90, 1, 0
    %v107 = vsel %vm91, 1, 0
    %v108 = vsel %vm92, 1, 0
    %v109 = vsel %vm93, 1, 0
    %v110 = vsel %vm94, 1, 0
    %v111 = vsel %vm95, 1, 0
    %v112 = vcvt.s32.f32 %v96
    %v113 = vcvt.s32.f32 %v97
    %v114 = vcvt.s32.f32 %v98
    %v115 = vcvt.s32.f32 %v99
    %v116 = vcvt.s32.f32 %v100
    %v117 = vcvt.s32.f32 %v101
    %v118 = vcvt.s32.f32 %v102
    %v119 = vcvt.s32.f32 %v103
    %v120 = vcvt.s32.f32 %v104
    %v121 = vcvt.s32.f32 %v105
    %v122 = vcvt.s32.f32 %v106
    %v123 = vcvt.s32.f32 %v107
    %v124 = vcvt.s32.f32 %v108
    %v125 = vcvt.s32.f32 %v109
    %v126 = vcvt.s32.f32 %v110
    %v127 = vcvt.s32.f32 %v111
    %v128 = vld [vmem:[#allocation5] sm:$0xff]
    %v129 = vld [vmem:[#allocation5 + $0x8] sm:$0xff]
    %v130 = vld [vmem:[#allocation5 + $0x10] sm:$0xff]
    %v131 = vld [vmem:[#allocation5 + $0x18] sm:$0xff]
    %v132 = vld [vmem:[#allocation5 + $0x20] sm:$0xff]
    %v133 = vld [vmem:[#allocation5 + $0x28] sm:$0xff]
    %v134 = vld [vmem:[#allocation5 + $0x30] sm:$0xff]
    %v135 = vld [vmem:[#allocation5 + $0x38] sm:$0xff]
    %v136 = vld [vmem:[#allocation5 + $0x40] sm:$0xff]
    %v137 = vld [vmem:[#allocation5 + $0x48] sm:$0xff]
    %v138 = vld [vmem:[#allocation5 + $0x50] sm:$0xff]
    %v139 = vld [vmem:[#allocation5 + $0x58] sm:$0xff]
    %v140 = vld [vmem:[#allocation5 + $0x60] sm:$0xff]
    %v141 = vld [vmem:[#allocation5 + $0x68] sm:$0xff]
    %v142 = vld [vmem:[#allocation5 + $0x70] sm:$0xff]
    %v143 = vld [vmem:[#allocation5 + $0x78] sm:$0xff]
    %v144 = vld [vmem:[#allocation7] sm:$0xff]
    %v145 = vld [vmem:[#allocation7 + $0x8] sm:$0xff]
    %v146 = vld [vmem:[#allocation7 + $0x10] sm:$0xff]
    %v147 = vld [vmem:[#allocation7 + $0x18] sm:$0xff]
    %v148 = vld [vmem:[#allocation7 + $0x20] sm:$0xff]
    %v149 = vld [vmem:[#allocation7 + $0x28] sm:$0xff]
    %v150 = vld [vmem:[#allocation7 + $0x30] sm:$0xff]
    %v151 = vld [vmem:[#allocation7 + $0x38] sm:$0xff]
    %v152 = vld [vmem:[#allocation7 + $0x40] sm:$0xff]
    %v153 = vld [vmem:[#allocation7 + $0x48] sm:$0xff]
    %v154 = vld [vmem:[#allocation7 + $0x50] sm:$0xff]
    %v155 = vld [vmem:[#allocation7 + $0x58] sm:$0xff]
    %v156 = vld [vmem:[#allocation7 + $0x60] sm:$0xff]
    %v157 = vld [vmem:[#allocation7 + $0x68] sm:$0xff]
    %v158 = vld [vmem:[#allocation7 + $0x70] sm:$0xff]
    %v159 = vld [vmem:[#allocation7 + $0x78] sm:$0xff]
    %160 = vmatprep.subr.mxu0 0.0
    %161 = vmatpush1.msra.mxu0 %v143
    %162 = vmatprep.subr.mxu0 0.0
    %163 = vmatpush1.msra.mxu0 %v142
    %164 = vmatprep.subr.mxu0 0.0
    %165 = vmatpush1.msra.mxu0 %v141
    %166 = vmatprep.subr.mxu0 0.0
    %167 = vmatpush1.msra.mxu0 %v140
    %168 = vmatprep.subr.mxu0 0.0
    %169 = vmatpush1.msra.mxu0 %v139
    %170 = vmatprep.subr.mxu0 0.0
    %171 = vmatpush1.msra.mxu0 %v138
    %172 = vmatprep.subr.mxu0 0.0
    %173 = vmatpush1.msra.mxu0 %v137
    %174 = vmatprep.subr.mxu0 0.0
    %175 = vmatpush1.msra.mxu0 %v136
    %176 = vmatprep.subr.mxu0 0.0
    %177 = vmatpush1.msra.mxu0 %v135
    %178 = vmatprep.subr.mxu0 0.0
    %179 = vmatpush1.msra.mxu0 %v134
    %180 = vmatprep.subr.mxu0 0.0
    %181 = vmatpush1.msra.mxu0 %v133
    %182 = vmatprep.subr.mxu0 0.0
    %183 = vmatpush1.msra.mxu0 %v132
    %184 = vmatprep.subr.mxu0 0.0
    %185 = vmatpush1.msra.mxu0 %v131
    %186 = vmatprep.subr.mxu0 0.0
    %187 = vmatpush1.msra.mxu0 %v130
    %188 = vmatprep.subr.mxu0 0.0
    %189 = vmatpush1.msra.mxu0 %v129
    %190 = vmatprep.subr.mxu0 0.0
    %191 = vmatpush1.msra.mxu0 %v128
    %192 = vmatprep.subr.mxu0 0.0
    %193 = vmatpush2.msra.mxu0 0.0
    %194 = vmatprep.subr.mxu0 0.0
    %195 = vmatpush2.msra.mxu0 0.0
    %196 = vmatprep.subr.mxu0 0.0
    %197 = vmatpush2.msra.mxu0 0.0
    %198 = vmatprep.subr.mxu0 0.0
    %199 = vmatpush2.msra.mxu0 0.0
    %200 = vmatprep.subr.mxu0 0.0
    %201 = vmatpush2.msra.mxu0 0.0
    %202 = vmatprep.subr.mxu0 0.0
    %203 = vmatpush2.msra.mxu0 0.0
    %204 = vmatprep.subr.mxu0 0.0
    %205 = vmatpush2.msra.mxu0 0.0
    %206 = vmatprep.subr.mxu0 0.0
    %207 = vmatpush2.msra.mxu0 0.0
    %208 = vmatprep.subr.mxu0 0.0
    %209 = vmatpush2.msra.mxu0 0.0
    %210 = vmatprep.subr.mxu0 0.0
    %211 = vmatpush2.msra.mxu0 0.0
    %212 = vmatprep.subr.mxu0 0.0
    %213 = vmatpush2.msra.mxu0 0.0
    %214 = vmatprep.subr.mxu0 0.0
    %215 = vmatpush2.msra.mxu0 0.0
    %216 = vmatprep.subr.mxu0 0.0
    %217 = vmatpush2.msra.mxu0 0.0
    %218 = vmatprep.subr.mxu0 0.0
    %219 = vmatpush2.msra.mxu0 0.0
    %220 = vmatprep.subr.mxu0 0.0
    %221 = vmatpush2.msra.mxu0 0.0
    %222 = vmatprep.subr.mxu0 0.0
    %223 = vmatpush2.msra.mxu0 0.0
    %224 = vmatprep.mubr.f32.mxu0 0.0
    %225 = vmatmul.mubr.f32.gmra.mxu0 %v112
    %v226 = vpop.f32.mrf.mxu0
    %v227 = vadd.f32 0.0, %v226
    %v228 = vpop.f32.mrf.mxu0
    %229 = vmatprep.mubr.f32.mxu0 0.0
    %230 = vmatmul.mubr.f32.gmra.mxu0 %v113
    %v231 = vpop.f32.mrf.mxu0
    %v232 = vadd.f32 0.0, %v231
    %v233 = vpop.f32.mrf.mxu0
    %234 = vmatprep.mubr.f32.mxu0 0.0
    %235 = vmatmul.mubr.f32.gmra.mxu0 %v114
    %v236 = vpop.f32.mrf.mxu0
    %v237 = vadd.f32 0.0, %v236
    %v238 = vpop.f32.mrf.mxu0
    %239 = vmatprep.mubr.f32.mxu0 0.0
    %240 = vmatmul.mubr.f32.gmra.mxu0 %v115
    %v241 = vpop.f32.mrf.mxu0
    %v242 = vadd.f32 0.0, %v241
    %v243 = vpop.f32.mrf.mxu0
    %244 = vmatprep.mubr.f32.mxu0 0.0
    %245 = vmatmul.mubr.f32.gmra.mxu0 %v116
    %v246 = vpop.f32.mrf.mxu0
    %v247 = vadd.f32 0.0, %v246
    %v248 = vpop.f32.mrf.mxu0
    %249 = vmatprep.mubr.f32.mxu0 0.0
    %250 = vmatmul.mubr.f32.gmra.mxu0 %v117
    %v251 = vpop.f32.mrf.mxu0
    %v252 = vadd.f32 0.0, %v251
    %v253 = vpop.f32.mrf.mxu0
    %254 = vmatprep.mubr.f32.mxu0 0.0
    %255 = vmatmul.mubr.f32.gmra.mxu0 %v118
    %v256 = vpop.f32.mrf.mxu0
    %v257 = vadd.f32 0.0, %v256
    %v258 = vpop.f32.mrf.mxu0
    %259 = vmatprep.mubr.f32.mxu0 0.0
    %260 = vmatmul.mubr.f32.gmra.mxu0 %v119
    %v261 = vpop.f32.mrf.mxu0
    %v262 = vadd.f32 0.0, %v261
    %v263 = vpop.f32.mrf.mxu0
    %264 = vmatprep.mubr.f32.mxu0 0.0
    %265 = vmatmul.mubr.f32.gmra.mxu0 %v120
    %v266 = vpop.f32.mrf.mxu0
    %v267 = vadd.f32 0.0, %v266
    %v268 = vpop.f32.mrf.mxu0
    %269 = vmatprep.mubr.f32.mxu0 0.0
    %270 = vmatmul.mubr.f32.gmra.mxu0 %v121
    %v271 = vpop.f32.mrf.mxu0
    %v272 = vadd.f32 0.0, %v271
    %v273 = vpop.f32.mrf.mxu0
    %274 = vmatprep.mubr.f32.mxu0 0.0
    %275 = vmatmul.mubr.f32.gmra.mxu0 %v122
    %v276 = vpop.f32.mrf.mxu0
    %v277 = vadd.f32 0.0, %v276
    %v278 = vpop.f32.mrf.mxu0
    %279 = vmatprep.mubr.f32.mxu0 0.0
    %280 = vmatmul.mubr.f32.gmra.mxu0 %v123
    %v281 = vpop.f32.mrf.mxu0
    %v282 = vadd.f32 0.0, %v281
    %v283 = vpop.f32.mrf.mxu0
    %284 = vmatprep.mubr.f32.mxu0 0.0
    %285 = vmatmul.mubr.f32.gmra.mxu0 %v124
    %v286 = vpop.f32.mrf.mxu0
    %v287 = vadd.f32 0.0, %v286
    %v288 = vpop.f32.mrf.mxu0
    %289 = vmatprep.mubr.f32.mxu0 0.0
    %290 = vmatmul.mubr.f32.gmra.mxu0 %v125
    %v291 = vpop.f32.mrf.mxu0
    %v292 = vadd.f32 0.0, %v291
    %v293 = vpop.f32.mrf.mxu0
    %294 = vmatprep.mubr.f32.mxu0 0.0
    %295 = vmatmul.mubr.f32.gmra.mxu0 %v126
    %v296 = vpop.f32.mrf.mxu0
    %v297 = vadd.f32 0.0, %v296
    %v298 = vpop.f32.mrf.mxu0
    %299 = vmatprep.mubr.f32.mxu0 0.0
    %300 = vmatmul.mubr.f32.gmra.mxu0 %v127
    %v301 = vpop.f32.mrf.mxu0
    %v302 = vadd.f32 0.0, %v301
    %v303 = vpop.f32.mrf.mxu0
    %304 = vdwg.mxu0
    %v305 = vadd.f32 %v144, %v227
    %v306 = vadd.f32 %v145, %v232
    %v307 = vadd.f32 %v146, %v237
    %v308 = vadd.f32 %v147, %v242
    %v309 = vadd.f32 %v148, %v247
    %v310 = vadd.f32 %v149, %v252
    %v311 = vadd.f32 %v150, %v257
    %v312 = vadd.f32 %v151, %v262
    %v313 = vadd.f32 %v152, %v267
    %v314 = vadd.f32 %v153, %v272
    %v315 = vadd.f32 %v154, %v277
    %v316 = vadd.f32 %v155, %v282
    %v317 = vadd.f32 %v156, %v287
    %v318 = vadd.f32 %v157, %v292
    %v319 = vadd.f32 %v158, %v297
    %v320 = vadd.f32 %v159, %v302
    %321 = vst [vmem:[#allocation7] sm:$0xff] %v305
    %322 = vst [vmem:[#allocation7 + $0x8] sm:$0xff] %v306
    %323 = vst [vmem:[#allocation7 + $0x10] sm:$0xff] %v307
    %324 = vst [vmem:[#allocation7 + $0x18] sm:$0xff] %v308
    %325 = vst [vmem:[#allocation7 + $0x20] sm:$0xff] %v309
    %326 = vst [vmem:[#allocation7 + $0x28] sm:$0xff] %v310
    %327 = vst [vmem:[#allocation7 + $0x30] sm:$0xff] %v311
    %328 = vst [vmem:[#allocation7 + $0x38] sm:$0xff] %v312
    %329 = vst [vmem:[#allocation7 + $0x40] sm:$0xff] %v313
    %330 = vst [vmem:[#allocation7 + $0x48] sm:$0xff] %v314
    %331 = vst [vmem:[#allocation7 + $0x50] sm:$0xff] %v315
    %332 = vst [vmem:[#allocation7 + $0x58] sm:$0xff] %v316
    %333 = vst [vmem:[#allocation7 + $0x60] sm:$0xff] %v317
    %334 = vst [vmem:[#allocation7 + $0x68] sm:$0xff] %v318
    %335 = vst [vmem:[#allocation7 + $0x70] sm:$0xff] %v319
    %336 = vst [vmem:[#allocation7 + $0x78] sm:$0xff] %v320
    // Predicated region
    $region22: #{tpu_custom_call.1} parent=1 // pred_check
      _
    $region23: #{tpu_custom_call.1} parent=1 // pred_check_branch
      %338 = sbr.rel (0) target = $region25
    $region24: #{tpu_custom_call.1} parent=1 // pred_region
      %s340 = ssub.s32 2048, 2048
      %341 = vsyncadd [#allocation4], %s340
      %s342 = sshll.u32 [#allocation7], 4
      %s343 = int_to_ptr.vmem [resolvable:$true] %s342
      %348 = dma.vmem_to_hbm [thread:$0]  %s343, 2048, %s2, [#allocation4], 128, 128, 8
    $region25: #{tpu_custom_call.1} parent=1 // pred_fallthru
      _
    // Predicated region
    $region26: #{tpu_custom_call.1} parent=1 // pred_check
      _
    $region27: #{tpu_custom_call.1} parent=1 // pred_check_branch
      %350 = sbr.rel (0) target = $region29
    $region28: #{tpu_custom_call.1} parent=1 // pred_region
      %351 = dma.done [#allocation4], 2048
    $region29: #{tpu_custom_call.1} parent=1 // pred_fallthru
      _
    %352 = vsyncpa [#allocation3], 1
    %353 = vsyncpa [#allocation6], 1
    %354 = vsyncpa [#allocation4], 1

</llo_original>
